<compile_context>
chip_gen: v5e
topology: v5e:2x2
jax: 0.10.0
libtpu: 0.0.40
codegen_flags: <defaults>
</compile_context>

<pallas_src>
import functools
import math

import numpy as np
import jax
import jax.numpy as jnp
from jax import lax
from jax.experimental import pallas as pl
from jax.experimental.pallas import tpu as pltpu


# ----------------------------- glue (plain python) -----------------------------

def _broadcast_params(params, num_features, name):
    assert isinstance(params, (list, tuple)), f"{name} must be a list"
    assert len(params), f"{name} cannot be empty"
    if not isinstance(params[0], (list, tuple)):
        return [list(params)] * num_features
    if len(params) == 1:
        return list(params) * num_features
    assert len(params) == num_features, name
    return [list(p) for p in params]


def generate_cell_anchors(sizes, aspect_ratios):
    """Canonical (0,0)-centered anchors, XYXY, shape (len(sizes)*len(aspect_ratios), 4)."""
    anchors = []
    for size in sizes:
        area = float(size) ** 2.0
        for aspect_ratio in aspect_ratios:
            w = math.sqrt(area / aspect_ratio)
            h = aspect_ratio * w
            anchors.append([-w / 2.0, -h / 2.0, w / 2.0, h / 2.0])
    return np.asarray(anchors, dtype=np.float32)


def _column_table(base, W, stride, offset):
    """Packed per-column table, shape (2, W*A*4).

    col = x*(A*4) + a*4 + c  maps to  base[a, c] + shift, split as
        out[y, col] = table[0, col] + y * table[1, col]
      table[0] = base + (x + offset)*stride      (c even: x coords)
               = base + offset*stride            (c odd:  y coords)
      table[1] = 0.0 (c even)  |  stride (c odd)
    """
    base = np.asarray(base, dtype=np.float32).reshape(-1)      # (A*4,)
    A4 = base.shape[0]
    col = np.arange(W * A4, dtype=np.int64)
    x = (col // A4).astype(np.float32)
    is_y = (col % 2) == 1                                       # c in {1, 3}
    flat_base = np.tile(base, W)
    shift_x = (x + np.float32(offset)) * np.float32(stride)
    offs_y = np.float32(offset) * np.float32(stride)
    const_part = (flat_base + np.where(is_y, offs_y, shift_x)).astype(np.float32)
    y_scale = np.where(is_y, np.float32(stride), np.float32(0.0)).astype(np.float32)
    return np.stack([const_part, y_scale], axis=0)              # (2, W*A*4)


# ----------------------------- Pallas kernel -----------------------------

_TILE_TARGET_BYTES = 2 * 1024 * 1024   # ~2 MiB row tiles -> pipelined stores


def _pick_tile_h(H, WA4):
    """Largest multiple-of-8 row count with tile size ~<= 2 MiB (or all of H)."""
    bytes_per_row = WA4 * 4
    rows = max(8, ((_TILE_TARGET_BYTES // bytes_per_row) // 8) * 8)
    if rows >= H:
        return H           # single block == full array dims (always legal)
    return rows


def _anchor_level_kernel(tab_ref, out_ref, *, tile_h):
    i = pl.program_id(0)
    tab = tab_ref[...]                       # (2, WA4)
    const_part = tab[0:1, :]                 # (1, WA4)
    y_scale = tab[1:2, :]                    # (1, WA4)
    # Tiny per-tile row column: (TILE_H, 1) iota + row offset, then broadcast.
    y_idx = lax.broadcasted_iota(jnp.int32, (tile_h, 1), 0) + i * tile_h
    y_col = y_idx.astype(jnp.float32)        # (TILE_H, 1)
    out_ref[...] = const_part + y_col * y_scale


@functools.lru_cache(maxsize=None)
def _level_call(H, WA4):
    """pallas_call producing one level's anchors as a lane-dense (H, WA4) slab."""
    tile_h = _pick_tile_h(H, WA4)
    grid = (pl.cdiv(H, tile_h),)
    out_bytes = H * WA4 * 4
    in_bytes = 2 * WA4 * 4
    return pl.pallas_call(
        functools.partial(_anchor_level_kernel, tile_h=tile_h),
        out_shape=jax.ShapeDtypeStruct((H, WA4), jnp.float32),
        grid_spec=pltpu.PrefetchScalarGridSpec(
            num_scalar_prefetch=0,
            grid=grid,
            in_specs=[pl.BlockSpec((2, WA4), lambda i: (0, 0))],
            out_specs=pl.BlockSpec((tile_h, WA4), lambda i: (i, 0)),
        ),
        compiler_params=pltpu.CompilerParams(
            dimension_semantics=("parallel",)),
        cost_estimate=pl.CostEstimate(
            flops=2 * H * WA4,
            transcendentals=0,
            bytes_accessed=out_bytes + in_bytes),
    )


@functools.lru_cache(maxsize=None)
def _build_anchor_fn(level_dims):
    """level_dims: tuple of (H, W*A*4) per level.  Returns jitted fn taking one
    packed (2, W*A*4) table per level and returning (Hi*Wi*Ai, 4) arrays."""
    calls = [_level_call(h, w) for (h, w) in level_dims]

    def run(*tables):
        outs = []
        for call, tab in zip(calls, tables):
            o = call(tab)
            # Row-major reshape only; element order already matches PyTorch XYXY.
            outs.append(o.reshape(-1, 4))
        return tuple(outs)

    return jax.jit(run)


# ----------------------------- module wrapper -----------------------------

class ATSSAnchorGenerator:
    box_dim = 4

    def __init__(self, sizes, aspect_ratios, strides, offset=0.5):
        self.strides = list(strides)
        self.num_features = len(self.strides)
        sizes = _broadcast_params(sizes, self.num_features, "sizes")
        aspect_ratios = _broadcast_params(aspect_ratios, self.num_features, "aspect_ratios")
        self.cell_anchors = [generate_cell_anchors(s, a) for s, a in zip(sizes, aspect_ratios)]
        self.offset = float(offset)
        assert 0.0 <= self.offset < 1.0, self.offset
        self._table_cache = {}

    @property
    def num_anchors(self):
        return [int(ca.shape[0]) for ca in self.cell_anchors]

    num_cell_anchors = num_anchors  # alias, as in the PyTorch module

    def _level_table(self, lvl, W):
        key = (lvl, W)
        if key not in self._table_cache:
            tab = _column_table(self.cell_anchors[lvl], W,
                                float(self.strides[lvl]), self.offset)
            self._table_cache[key] = jnp.asarray(tab)
        return self._table_cache[key]

    def __call__(self, features):
        """features: list of NCHW arrays. Returns list of (Hi*Wi*Ai, 4) anchor tensors."""
        grid_sizes = [tuple(int(s) for s in f.shape[-2:]) for f in features]
        level_dims = []
        tables = []
        for lvl, (H, W) in enumerate(grid_sizes):
            A = int(self.cell_anchors[lvl].shape[0])
            tables.append(self._level_table(lvl, W))
            level_dims.append((H, W * A * 4))
        fn = _build_anchor_fn(tuple(level_dims))
        # TODO(synk): detectron2 wraps each array in Boxes(); returning raw arrays.
        return list(fn(*tables))


# ----------------------------- reference (pure JAX, mirrors PyTorch) -----------------------------

def _ref_grid_anchors(base, H, W, stride, offset):
    base = jnp.asarray(base, dtype=jnp.float32)
    sx = (jnp.arange(W, dtype=jnp.float32) + offset) * stride
    sy = (jnp.arange(H, dtype=jnp.float32) + offset) * stride
    yy, xx = jnp.meshgrid(sy, sx, indexing="ij")
    xf, yf = xx.reshape(-1), yy.reshape(-1)
    shifts = jnp.stack([xf, yf, xf, yf], axis=1)
    return (shifts[:, None, :] + base[None, :, :]).reshape(-1, 4)


# ----------------------------- main -----------------------------

if __name__ == "__main__":
    key = jax.random.PRNGKey(0)
    k1, k2 = jax.random.split(key)

    # Two feature levels, NCHW, small shapes (only H, W are used by the forward).
    feat0 = jax.random.normal(k1, (2, 4, 16, 16), dtype=jnp.float32)  # stride 8
    feat1 = jax.random.normal(k2, (2, 4, 8, 8), dtype=jnp.float32)    # stride 16
    features = [feat0, feat1]

    gen = ATSSAnchorGenerator(
        sizes=[[32.0, 64.0], [64.0, 128.0]],
        aspect_ratios=[0.5, 1.0, 2.0],   # broadcast over both levels -> A = 2*3 = 6
        strides=[8, 16],
        offset=0.5,
    )

    anchors = gen(features)
    anchors = [jax.block_until_ready(a) for a in anchors]

    # Verify against a pure-JAX reference of the PyTorch semantics.
    ok = True
    for a, f, stride, base in zip(anchors, features, gen.strides, gen.cell_anchors):
        H, W = f.shape[-2:]
        ref = _ref_grid_anchors(base, int(H), int(W), stride, gen.offset)
        assert a.shape == ref.shape and a.dtype == jnp.float32
        if not jnp.allclose(a, ref, atol=1e-4, rtol=1e-5):
            ok = False

    if ok:
        print("KERNEL_OK")
    else:
        print("MISMATCH")
</pallas_src>

<mosaic_0001>
module attributes {stable_mosaic.version = 11 : i64} {
  func.func @_anchor_level_kernel(%arg0: i32, %arg1: memref<2x192xf32, #tpu.memory_space<vmem>>, %arg2: memref<8x192xf32, #tpu.memory_space<vmem>>) attributes {dimension_semantics = [#tpu.dimension_semantics<parallel>], iteration_bounds = array<i64: 1>, scalar_prefetch = 0 : i64, scratch_operands = 0 : i64, tpu.core_type = #tpu.core_type<tc>, window_params = [{pipeline_mode = #tpu.pipeline_mode<synchronous>, transform_indices = @transform_0, window_bounds = array<i64: 2, 192>}, {transform_indices = @transform_1, window_bounds = array<i64: 8, 192>}]} {
    %c0 = arith.constant 0 : index
    %c0_0 = arith.constant 0 : index
    %0 = vector.load %arg1[%c0, %c0_0] : memref<2x192xf32, #tpu.memory_space<vmem>>, vector<2x192xf32>
    %1 = vector.extract_strided_slice %0 {offsets = [0, 0], sizes = [1, 192], strides = [1, 1]} : vector<2x192xf32> to vector<1x192xf32>
    %2 = vector.extract_strided_slice %0 {offsets = [1, 0], sizes = [1, 192], strides = [1, 1]} : vector<2x192xf32> to vector<1x192xf32>
    %3 = tpu.iota {dimensions = array<i32: 0>} : vector<8x1xi32>
    %c8_i32 = arith.constant 8 : i32
    %4 = arith.muli %arg0, %c8_i32 : i32
    %5 = vector.broadcast %4 : i32 to vector<8x1xi32>
    %6 = arith.addi %3, %5 : vector<8x1xi32>
    %7 = arith.sitofp %6 : vector<8x1xi32> to vector<8x1xf32>
    %8 = vector.broadcast %7 : vector<8x1xf32> to vector<8x192xf32>
    %9 = vector.broadcast %2 : vector<1x192xf32> to vector<8x192xf32>
    %10 = arith.mulf %8, %9 : vector<8x192xf32>
    %11 = vector.broadcast %1 : vector<1x192xf32> to vector<8x192xf32>
    %12 = arith.addf %11, %10 : vector<8x192xf32>
    %c0_1 = arith.constant 0 : index
    %c0_2 = arith.constant 0 : index
    %13 = vector.load %arg2[%c0_1, %c0_2] : memref<8x192xf32, #tpu.memory_space<vmem>>, vector<8x192xf32>
    tpu.vector_store %arg2[%c0_1, %c0_2], %12 {strides = array<i32>} : memref<8x192xf32, #tpu.memory_space<vmem>>, vector<8x192xf32>,
    return
  }
  func.func @transform_0(%arg0: i32) -> (i32, i32) {
    %c0_i32 = arith.constant 0 : i32
    %c0_i32_0 = arith.constant 0 : i32
    %c0_i32_1 = arith.constant 0 : i32
    return %c0_i32, %c0_i32_0 : i32, i32
  }
  func.func @transform_1(%arg0: i32) -> (i32, i32) {
    %c0_i32 = arith.constant 0 : i32
    %c0_i32_0 = arith.constant 0 : i32
    return %arg0, %c0_i32 : i32, i32
  }
}

module attributes {stable_mosaic.version = 11 : i64} {
  func.func @_anchor_level_kernel(%arg0: i32, %arg1: memref<2x384xf32, #tpu.memory_space<vmem>>, %arg2: memref<16x384xf32, #tpu.memory_space<vmem>>) attributes {dimension_semantics = [#tpu.dimension_semantics<parallel>], iteration_bounds = array<i64: 1>, scalar_prefetch = 0 : i64, scratch_operands = 0 : i64, tpu.core_type = #tpu.core_type<tc>, window_params = [{pipeline_mode = #tpu.pipeline_mode<synchronous>, transform_indices = @transform_0, window_bounds = array<i64: 2, 384>}, {transform_indices = @transform_1, window_bounds = array<i64: 16, 384>}]} {
    %c0 = arith.constant 0 : index
    %c0_0 = arith.constant 0 : index
    %0 = vector.load %arg1[%c0, %c0_0] : memref<2x384xf32, #tpu.memory_space<vmem>>, vector<2x384xf32>
    %1 = vector.extract_strided_slice %0 {offsets = [0, 0], sizes = [1, 384], strides = [1, 1]} : vector<2x384xf32> to vector<1x384xf32>
    %2 = vector.extract_strided_slice %0 {offsets = [1, 0], sizes = [1, 384], strides = [1, 1]} : vector<2x384xf32> to vector<1x384xf32>
    %3 = tpu.iota {dimensions = array<i32: 0>} : vector<16x1xi32>
    %c16_i32 = arith.constant 16 : i32
    %4 = arith.muli %arg0, %c16_i32 : i32
    %5 = vector.broadcast %4 : i32 to vector<16x1xi32>
    %6 = arith.addi %3, %5 : vector<16x1xi32>
    %7 = arith.sitofp %6 : vector<16x1xi32> to vector<16x1xf32>
    %8 = vector.broadcast %7 : vector<16x1xf32> to vector<16x384xf32>
    %9 = vector.broadcast %2 : vector<1x384xf32> to vector<16x384xf32>
    %10 = arith.mulf %8, %9 : vector<16x384xf32>
    %11 = vector.broadcast %1 : vector<1x384xf32> to vector<16x384xf32>
    %12 = arith.addf %11, %10 : vector<16x384xf32>
    %c0_1 = arith.constant 0 : index
    %c0_2 = arith.constant 0 : index
    %13 = vector.load %arg2[%c0_1, %c0_2] : memref<16x384xf32, #tpu.memory_space<vmem>>, vector<16x384xf32>
    tpu.vector_store %arg2[%c0_1, %c0_2], %12 {strides = array<i32>} : memref<16x384xf32, #tpu.memory_space<vmem>>, vector<16x384xf32>,
    return
  }
  func.func @transform_0(%arg0: i32) -> (i32, i32) {
    %c0_i32 = arith.constant 0 : i32
    %c0_i32_0 = arith.constant 0 : i32
    %c0_i32_1 = arith.constant 0 : i32
    return %c0_i32, %c0_i32_0 : i32, i32
  }
  func.func @transform_1(%arg0: i32) -> (i32, i32) {
    %c0_i32 = arith.constant 0 : i32
    %c0_i32_0 = arith.constant 0 : i32
    return %arg0, %c0_i32 : i32, i32
  }
}

</mosaic_0001>

<llo_original>
// kernel: run.3
$region0: #{run.3}
  #allocation0 [shape = 'u32[]', space=smem, size = 0x4, offset = 0x4, fixed_abs, tag = 'smem constant byte address 0x4 - core index']
  #allocation1 [shape = 'u32[72,128]{1,0:T(1,128)}', space=vmem, size = 0x9000, scoped, tag = 'internal scratch']
  %s0 = inlined_call_operand.vmem [shape: f32[2,192], index: 0, kind: input, shape index: {}]
  %s1 = inlined_call_operand.vmem [shape: f32[8,192], index: 1, kind: output, shape index: {}]
  %s2 = sld [smem:[#allocation0]]
  $region14: #{run.3} parent=0
    _
  %s4 = ssub.s32 1, %s2
  %s5 = scalar_select 0, %s4, %s2
  // Predicated region
  $region2: #{run.3} parent=0 // pred_check
    _
  $region3: #{run.3} parent=0 // pred_check_branch
    %7 = sbr.rel (0) target = $region5
  $region4: #{run.3} parent=0 // pred_region
    _
  $region5: #{run.3} parent=0 // pred_fallthru
    _
  %v8 = vld [vmem:[%s0] sm:$0xf]
  %v9 = vlaneseq
  %v10 = vshrl.u32 %v9, 7
  %s11 = smul.u32 0, 8
  %v12 = vstv %s11
  %v13 = vadd.s32 %v10, %v12
  %v14 = vcvt.s32.f32 %v13
  %v16 = vperm.slane %v8, 1
  %v17 = vperm.slane %v8, 3
  %v20 = vperm.slane %v16, 1
  %v21 = vperm.slane %v17, 1
  %v22 = vmul.f32 %v14, %v20
  %v23 = vmul.f32 %v14, %v21
  %v24 = vperm.slane %v8, 0
  %v25 = vperm.slane %v8, 2
  %v28 = vperm.slane %v24, 0
  %v29 = vperm.slane %v25, 0
  %v30 = vadd.f32 %v28, %v22
  %v31 = vadd.f32 %v29, %v23
  %32 = vst [vmem:[%s1] sm:$0xff] %v30
  %vm33 = vcmask 523264
  %34 = vst.msk [vmem:[%s1 + $0x8] sm:$0xff] %vm33, %v31
  // Predicated region
  $region6: #{run.3} parent=0 // pred_check
    _
  $region7: #{run.3} parent=0 // pred_check_branch
    %36 = sbr.rel (0) target = $region9
  $region8: #{run.3} parent=0 // pred_region
    _
  $region9: #{run.3} parent=0 // pred_fallthru
    _
  // Predicated region
  $region10: #{run.3} parent=0 // pred_check
    _
  $region11: #{run.3} parent=0 // pred_check_branch
    %38 = sbr.rel (0) target = $region13
  $region12: #{run.3} parent=0 // pred_region
    _
  $region13: #{run.3} parent=0 // pred_fallthru
    _

// kernel: run.2
$region0: #{run.2}
  #allocation0 [shape = 'u32[]', space=smem, size = 0x4, offset = 0x4, fixed_abs, tag = 'smem constant byte address 0x4 - core index']
  #allocation1 [shape = 'u32[72,128]{1,0:T(1,128)}', space=vmem, size = 0x9000, scoped, tag = 'internal scratch']
  %s0 = inlined_call_operand.hbm [shape: f32[2,384], index: 0, kind: input, shape index: {}]
  %s1 = inlined_call_operand.vmem [shape: f32[16,384], index: 1, kind: output, shape index: {}]
  %s2 = sld [smem:[#allocation0]]
  $region18: #{run.2} parent=0
    _
  %s4 = ssub.s32 1, %s2
  %s5 = scalar_select 0, %s4, %s2
  $region1: #{run.2} parent=0
    #allocation2 [shape = 'u8[3072]{0}', space=vmem, size = 0xc00, scoped, tag = 'input window, operand 0, single buffered']
    #allocation3 [shape = 's32[1]{0}', space=sflag, size = 0x4, scoped, tag = 'scoped memory for run.2']
    %6 = vsyncpa [#allocation3], 0
    // Predicated region
    $region2: #{run.2} parent=1 // pred_check
      _
    $region3: #{run.2} parent=1 // pred_check_branch
      %8 = sbr.rel (0) target = $region5
    $region4: #{run.2} parent=1 // pred_region
      %10 = vsyncadd [#allocation3], 0
      %s12 = sshll.u32 %s0, 4
      %s13 = int_to_ptr.hbm [resolvable:$true] %s12
      %s14 = sshll.u32 [#allocation2], 4
      %s15 = int_to_ptr.vmem [resolvable:$true] %s14
      %17 = dma.hbm_to_vmem [thread:$0]  %s13, 96, %s15, [#allocation3]
    $region5: #{run.2} parent=1 // pred_fallthru
      _
    // Predicated region
    $region6: #{run.2} parent=1 // pred_check
      _
    $region7: #{run.2} parent=1 // pred_check_branch
      %19 = sbr.rel (0) target = $region9
    $region8: #{run.2} parent=1 // pred_region
      %21 = dma.done [#allocation3], 96
    $region9: #{run.2} parent=1 // pred_fallthru
      _
    %v22 = vld [vmem:[#allocation2] sm:$0x3f]
    %v23 = vlaneseq
    %v24 = vshrl.u32 %v23, 7
    %v25 = vadd.s32 %v24, 8
    %s26 = smul.u32 0, 16
    %v27 = vstv %s26
    %v28 = vadd.s32 %v24, %v27
    %v29 = vadd.s32 %v25, %v27
    %v30 = vcvt.s32.f32 %v28
    %v31 = vcvt.s32.f32 %v29
    %v33 = vperm.slane %v22, 1
    %v34 = vperm.slane %v22, 3
    %v35 = vperm.slane %v22, 5
    %v39 = vperm.slane %v33, 1
    %v40 = vperm.slane %v34, 1
    %v41 = vperm.slane %v35, 1
    %v42 = vmul.f32 %v30, %v39
    %v43 = vmul.f32 %v30, %v40
    %v44 = vmul.f32 %v30, %v41
    %v45 = vmul.f32 %v31, %v39
    %v46 = vmul.f32 %v31, %v40
    %v47 = vmul.f32 %v31, %v41
    %v48 = vperm.slane %v22, 0
    %v49 = vperm.slane %v22, 2
    %v50 = vperm.slane %v22, 4
    %v54 = vperm.slane %v48, 0
    %v55 = vperm.slane %v49, 0
    %v56 = vperm.slane %v50, 0
    %v57 = vadd.f32 %v54, %v42
    %v58 = vadd.f32 %v55, %v43
    %v59 = vadd.f32 %v56, %v44
    %v60 = vadd.f32 %v54, %v45
    %v61 = vadd.f32 %v55, %v46
    %v62 = vadd.f32 %v56, %v47
    %63 = vst [vmem:[%s1] sm:$0xff] %v57
    %64 = vst [vmem:[%s1 + $0x8] sm:$0xff] %v58
    %65 = vst [vmem:[%s1 + $0x10] sm:$0xff] %v59
    %66 = vst [vmem:[%s1 + $0x18] sm:$0xff] %v60
    %67 = vst [vmem:[%s1 + $0x20] sm:$0xff] %v61
    %68 = vst [vmem:[%s1 + $0x28] sm:$0xff] %v62
    // Predicated region
    $region10: #{run.2} parent=1 // pred_check
      _
    $region11: #{run.2} parent=1 // pred_check_branch
      %70 = sbr.rel (0) target = $region13
    $region12: #{run.2} parent=1 // pred_region
      _
    $region13: #{run.2} parent=1 // pred_fallthru
      _
    // Predicated region
    $region14: #{run.2} parent=1 // pred_check
      _
    $region15: #{run.2} parent=1 // pred_check_branch
      %72 = sbr.rel (0) target = $region17
    $region16: #{run.2} parent=1 // pred_region
      _
    $region17: #{run.2} parent=1 // pred_fallthru
      _
    %73 = vsyncpa [#allocation3], 1

</llo_original>
